<compile_context>
chip_gen: v7x
topology: tpu7x:2x2x1
jax: 0.10.0
libtpu: 0.0.40
codegen_flags: <defaults>
</compile_context>

<pallas_src>
import jax
import jax.numpy as jnp
from jax.experimental import pallas as pl
from jax.experimental.pallas import tpu as pltpu


# ---------------------------------------------------------------------------
# Fused kernel: 1x1 conv (channel matmul) + folded BN + SiLU
# Layout inside the kernel: channels on sublanes, spatial tile on lanes.
# ---------------------------------------------------------------------------
def _conv1x1_bn_silu_kernel(x_ref, w_ref, scale_ref, shift_ref, o_ref):
    # x_ref:     (1, C1, TM)  activation tile (spatial on the 128-lane axis)
    # w_ref:     (C2, C1)     conv weight (PyTorch (c2, c1, 1, 1) squeezed)
    # scale_ref: (C2, 1)      folded BN scale = gamma / sqrt(var + eps)
    # shift_ref: (C2, 1)      folded BN shift = beta - mean * scale
    # o_ref:     (1, C2, TM)
    x = x_ref[0]                                                      # (C1, TM)
    z = jnp.dot(w_ref[...], x, preferred_element_type=jnp.float32)   # (C2, TM)
    z = z * scale_ref[...] + shift_ref[...]
    # SiLU: z * sigmoid(z) = z / (1 + exp(-z)); exp + approx recip -> EUP slot.
    silu = z * pl.reciprocal(1.0 + jnp.exp(-z), approx=True)
    o_ref[0] = silu.astype(o_ref.dtype)


def _pick_spatial_tile(m, target=2048):
    """Largest 128-aligned divisor of m that is <= target (else the full m)."""
    if m % 128 != 0 or m <= 128:
        return m
    t = min(target - target % 128, m)
    while m % t != 0:
        t -= 128
    return t


def conv1x1_bn_silu(x_ncm, w, scale, shift, *, tm=None, interpret=False):
    """x_ncm: (N, C1, M) with M = H*W.  Returns (N, C2, M)."""
    n, c1, m = x_ncm.shape
    c2 = w.shape[0]
    if tm is None:
        tm = _pick_spatial_tile(m)
    assert m % tm == 0, (m, tm)

    itemsize = x_ncm.dtype.itemsize
    flops = 2 * n * m * c1 * c2 + 4 * n * m * c2
    bytes_accessed = (n * c1 * m * itemsize            # x
                      + c2 * c1 * 4 + 2 * c2 * 4       # w, scale, shift
                      + n * c2 * m * itemsize)         # out

    return pl.pallas_call(
        _conv1x1_bn_silu_kernel,
        out_shape=jax.ShapeDtypeStruct((n, c2, m), x_ncm.dtype),
        grid=(n, m // tm),
        in_specs=[
            pl.BlockSpec((1, c1, tm), lambda i, j: (i, 0, j)),
            pl.BlockSpec((c2, c1), lambda i, j: (0, 0)),
            pl.BlockSpec((c2, 1), lambda i, j: (0, 0)),
            pl.BlockSpec((c2, 1), lambda i, j: (0, 0)),
        ],
        out_specs=pl.BlockSpec((1, c2, tm), lambda i, j: (i, 0, j)),
        compiler_params=pltpu.CompilerParams(
            dimension_semantics=("parallel", "parallel")),
        cost_estimate=pl.CostEstimate(
            flops=flops,
            transcendentals=n * m * c2,
            bytes_accessed=bytes_accessed),
        interpret=interpret,
    )(x_ncm, w, scale.reshape(c2, 1), shift.reshape(c2, 1))


# ---------------------------------------------------------------------------
# Conv.forward wrapper (NCHW in / NCHW out, like PyTorch) for the module's
# default config: k=1, s=1, p=autopad(1)=0, g=1, bias=False, act=SiLU.
# ---------------------------------------------------------------------------
def conv_forward(x_nchw, params):
    # TODO(synk): k>1 / stride>1 / grouped Conv variants are not implemented;
    # this covers the module's default constructor arguments (k=1, s=1, g=1).
    n, c1, h, w_sp = x_nchw.shape
    x = x_nchw.reshape(n, c1, h * w_sp)   # free view: spatial is already last/contiguous
    out = conv1x1_bn_silu(x, params["w"], params["scale"], params["shift"])
    c2 = params["w"].shape[0]
    return out.reshape(n, c2, h, w_sp)


# Pure-JAX reference (exact sigmoid) for a correctness sanity check.
def conv_forward_ref(x_nchw, params):
    z = jnp.einsum("oc,nchw->nohw", params["w"], x_nchw)
    z = z * params["scale"][None, :, None, None] + params["shift"][None, :, None, None]
    return z * jax.nn.sigmoid(z)


# ---------------------------------------------------------------------------
# Deterministic synthetic parameters (BN folded to scale/shift, eval mode)
# ---------------------------------------------------------------------------
def make_params(c1, c2, key, eps=1e-5):
    ks = jax.random.split(key, 5)
    w = 0.1 * jax.random.normal(ks[0], (c2, c1), jnp.float32)   # (c2, c1, 1, 1) squeezed
    gamma = 1.0 + 0.1 * jax.random.normal(ks[1], (c2,), jnp.float32)
    beta = 0.1 * jax.random.normal(ks[2], (c2,), jnp.float32)
    mean = 0.1 * jax.random.normal(ks[3], (c2,), jnp.float32)
    var = 1.0 + 0.1 * jnp.abs(jax.random.normal(ks[4], (c2,), jnp.float32))
    scale = gamma / jnp.sqrt(var + eps)
    shift = beta - mean * scale
    return {"w": w, "scale": scale, "shift": shift}


if __name__ == "__main__":
    key = jax.random.PRNGKey(0)
    kx, kp = jax.random.split(key)

    N, C1, H, W = 2, 4, 16, 16
    C2 = 8

    x = jax.random.normal(kx, (N, C1, H, W), jnp.float32)   # NCHW, like PyTorch
    params = make_params(C1, C2, kp)

    out = jax.jit(conv_forward)(x, params)
    jax.block_until_ready(out)

    assert out.shape == (N, C2, H, W), out.shape

    ref = conv_forward_ref(x, params)
    err = float(jnp.max(jnp.abs(out - ref)))
    assert jnp.allclose(out, ref, rtol=5e-3, atol=5e-3), err

    print("KERNEL_OK")
</pallas_src>

<mosaic_0001>
module attributes {stable_mosaic.version = 11 : i64} {
  func.func @_conv1x1_bn_silu_kernel(%arg0: i32, %arg1: i32, %arg2: memref<1x4x256xf32, #tpu.memory_space<vmem>>, %arg3: memref<8x4xf32, #tpu.memory_space<vmem>>, %arg4: memref<8x1xf32, #tpu.memory_space<vmem>>, %arg5: memref<8x1xf32, #tpu.memory_space<vmem>>, %arg6: memref<1x8x256xf32, #tpu.memory_space<vmem>>) attributes {dimension_semantics = [#tpu.dimension_semantics<parallel>, #tpu.dimension_semantics<parallel>], iteration_bounds = array<i64: 2, 1>, scalar_prefetch = 0 : i64, scratch_operands = 0 : i64, tpu.core_type = #tpu.core_type<tc>, window_params = [{transform_indices = @transform_0, window_bounds = array<i64: 1, 4, 256>}, {pipeline_mode = #tpu.pipeline_mode<synchronous>, transform_indices = @transform_1, window_bounds = array<i64: 8, 4>}, {pipeline_mode = #tpu.pipeline_mode<synchronous>, transform_indices = @transform_2, window_bounds = array<i64: 8, 1>}, {pipeline_mode = #tpu.pipeline_mode<synchronous>, transform_indices = @transform_3, window_bounds = array<i64: 8, 1>}, {transform_indices = @transform_4, window_bounds = array<i64: 1, 8, 256>}]} {
    %c0 = arith.constant 0 : index
    %c0_0 = arith.constant 0 : index
    %c0_1 = arith.constant 0 : index
    %0 = vector.load %arg2[%c0, %c0_0, %c0_1] : memref<1x4x256xf32, #tpu.memory_space<vmem>>, vector<1x4x256xf32>
    %1 = vector.shape_cast %0 : vector<1x4x256xf32> to vector<4x256xf32>
    %c0_2 = arith.constant 0 : index
    %c0_3 = arith.constant 0 : index
    %2 = vector.load %arg3[%c0_2, %c0_3] : memref<8x4xf32, #tpu.memory_space<vmem>>, vector<8x4xf32>
    %cst = arith.constant dense<0.000000e+00> : vector<8x256xf32>
    %3 = tpu.matmul %2, %1, %cst {dimension_numbers = #tpu.dot_dimension_numbers<[1], [0], [0], [1], [0, 0, 1, 1], [], []>} : vector<8x4xf32>, vector<4x256xf32>, vector<8x256xf32> -> vector<8x256xf32>
    %c0_4 = arith.constant 0 : index
    %c0_5 = arith.constant 0 : index
    %4 = vector.load %arg4[%c0_4, %c0_5] : memref<8x1xf32, #tpu.memory_space<vmem>>, vector<8x1xf32>
    %5 = vector.broadcast %4 : vector<8x1xf32> to vector<8x256xf32>
    %6 = arith.mulf %3, %5 : vector<8x256xf32>
    %c0_6 = arith.constant 0 : index
    %c0_7 = arith.constant 0 : index
    %7 = vector.load %arg5[%c0_6, %c0_7] : memref<8x1xf32, #tpu.memory_space<vmem>>, vector<8x1xf32>
    %8 = vector.broadcast %7 : vector<8x1xf32> to vector<8x256xf32>
    %9 = arith.addf %6, %8 : vector<8x256xf32>
    %cst_8 = arith.constant 0.000000e+00 : f32
    %10 = vector.broadcast %cst_8 : f32 to vector<8x256xf32>
    %11 = arith.subf %10, %9 : vector<8x256xf32>
    %12 = math.exp %11 : vector<8x256xf32>
    %cst_9 = arith.constant 1.000000e+00 : f32
    %13 = vector.broadcast %cst_9 : f32 to vector<8x256xf32>
    %14 = arith.addf %13, %12 : vector<8x256xf32>
    %15 = tpu.reciprocal %14 {approx = true} : vector<8x256xf32> -> vector<8x256xf32>
    %16 = arith.mulf %9, %15 : vector<8x256xf32>
    %c0_10 = arith.constant 0 : index
    %c0_11 = arith.constant 0 : index
    %c0_12 = arith.constant 0 : index
    %17 = vector.load %arg6[%c0_10, %c0_11, %c0_12] : memref<1x8x256xf32, #tpu.memory_space<vmem>>, vector<1x8x256xf32>
    %18 = vector.shape_cast %17 : vector<1x8x256xf32> to vector<8x256xf32>
    %19 = vector.shape_cast %16 : vector<8x256xf32> to vector<1x8x256xf32>
    tpu.vector_store %arg6[%c0_10, %c0_11, %c0_12], %19 {strides = array<i32>} : memref<1x8x256xf32, #tpu.memory_space<vmem>>, vector<1x8x256xf32>,
    return
  }
  func.func @transform_0(%arg0: i32, %arg1: i32) -> (i32, i32, i32) {
    %c0_i32 = arith.constant 0 : i32
    %c0_i32_0 = arith.constant 0 : i32
    return %arg0, %c0_i32, %arg1 : i32, i32, i32
  }
  func.func @transform_1(%arg0: i32, %arg1: i32) -> (i32, i32) {
    %c0_i32 = arith.constant 0 : i32
    %c0_i32_0 = arith.constant 0 : i32
    %c0_i32_1 = arith.constant 0 : i32
    return %c0_i32, %c0_i32_0 : i32, i32
  }
  func.func @transform_2(%arg0: i32, %arg1: i32) -> (i32, i32) {
    %c0_i32 = arith.constant 0 : i32
    %c0_i32_0 = arith.constant 0 : i32
    %c0_i32_1 = arith.constant 0 : i32
    return %c0_i32, %c0_i32_0 : i32, i32
  }
  func.func @transform_3(%arg0: i32, %arg1: i32) -> (i32, i32) {
    %c0_i32 = arith.constant 0 : i32
    %c0_i32_0 = arith.constant 0 : i32
    %c0_i32_1 = arith.constant 0 : i32
    return %c0_i32, %c0_i32_0 : i32, i32
  }
  func.func @transform_4(%arg0: i32, %arg1: i32) -> (i32, i32, i32) {
    %c0_i32 = arith.constant 0 : i32
    %c0_i32_0 = arith.constant 0 : i32
    return %arg0, %c0_i32, %arg1 : i32, i32, i32
  }
}

</mosaic_0001>

<llo_original>
// kernel: conv_forward.1
$region0: #{conv_forward.1}
  #allocation0 [shape = 'u32[]', space=smem, size = 0x4, offset = 0x4, fixed_abs, tag = 'smem constant byte address 0x4 - core index']
  #allocation1 [shape = 'u32[144,128]{1,0:T(1,128)}', space=vmem, size = 0x12000, scoped, tag = 'internal scratch']
  %s0 = inlined_call_operand.vmem [shape: f32[2,4,256], index: 0, kind: input, shape index: {}]
  %s1 = inlined_call_operand.vmem [shape: f32[8,4], index: 1, kind: input, shape index: {}]
  %s2 = inlined_call_operand.vmem [shape: f32[8,1], index: 2, kind: input, shape index: {}]
  %s3 = inlined_call_operand.vmem [shape: f32[8,1], index: 3, kind: input, shape index: {}]
  %s4 = inlined_call_operand.vmem [shape: f32[2,8,256], index: 4, kind: output, shape index: {}]
  %s5 = sld [smem:[#allocation0]]
  $region49: #{conv_forward.1} parent=0
    _
  %s7 = ssub.s32 1, %s5
  %s8 = scalar_select 0, %s7, %s5
  loop: start=0, step=1, limit=4
  $region2: #{conv_forward.1} parent=0 // loop_pre_header
    _
  $region3: #{conv_forward.1} parent=0 // loop_header
    %s10 = sphi 0, %s14
    %p11 = scmp.ge.s32.totalorder %s10, 4
    %s17 = sphi 0, %s29
    %s18 = sphi 0, %s25
    %s19 = sphi 0, %s17
    %s20 = sphi 0, %s18
    %s21 = sphi 0, %s19
    %s22 = sphi 0, %s20
    %s34 = sphi 0, %s36
    %s37 = sphi 0, %s34
    %s38 = sphi 0, %s37
    %s54 = sphi 0, %s38
    %s58 = sphi 0, %s58
    %s60 = sphi 0, %s58
    %s61 = sphi 0, %s60
    %s75 = sphi 0, %s61
    %s79 = sphi 0, %s79
    %s81 = sphi 0, %s79
    %s82 = sphi 0, %s81
    %s96 = sphi 0, %s82
    %s100 = sphi 0, %s100
    %s102 = sphi 0, %s100
    %s103 = sphi 0, %s102
    %s117 = sphi 0, %s103
    %s125 = sphi 0, %s127
    %s128 = sphi 0, %s125
    %s129 = sphi 0, %s128
    %s145 = sphi 0, %s129
  $region4: #{conv_forward.1} parent=0 // loop_header_branch
    %13 = sbr.rel (%p11) target = $region8
  $region5: #{conv_forward.1} parent=0 // loop_body
    %s15 = ssub.s32 %s10, 1
    %s16 = ssub.s32 %s10, 2
    %s23 = sadd.s32 1, %s18
    %p24 = scmp.ge.s32.totalorder %s23, 1
    %s25 = scalar_select %p24, 0, %s23
    %s26 = sadd.s32 1, %s17
    %s27 = scalar_select %p24, %s26, %s17
    %p28 = scmp.ge.s32.totalorder %s27, 2
    %s29 = scalar_select %p28, 0, %s27
    %s30 = ssub.s32 %s17, %s29
    %s31 = ssub.s32 %s18, %s25
    %s32 = sor.u32 %s30, %s31
    %p33 = scmp.eq.s32.totalorder %s32, 0
    %s35 = sadd.s32 %s34, 1
    %s36 = scalar_select %p33, %s34, %s35
    %p39 = pneg %p33
    %p40 = scmp.eq.s32.totalorder %s10, 1
    %p41 = por %p39, %p40
    %p42 = scmp.ne.s32.totalorder %s34, %s37
    %p43 = scmp.eq.s32.totalorder %s10, 0
    %p44 = por %p42, %p43
    %p45 = scmp.ne.s32.totalorder %s34, %s37
    %p46 = scmp.eq.s32.totalorder %s15, 1
    %p47 = por %p45, %p46
    %p48 = scmp.ne.s32.totalorder %s37, %s38
    %p49 = scmp.eq.s32.totalorder %s15, 0
    %p50 = por %p48, %p49
    %p51 = scmp.ne.s32.totalorder %s37, %s38
    %p52 = scmp.eq.s32.totalorder %s16, 1
    %p53 = por %p51, %p52
    %p55 = scmp.ne.s32.totalorder %s38, %s54
    %p56 = scmp.eq.s32.totalorder %s16, 0
    %p57 = por %p55, %p56
    %s59 = sadd.s32 %s58, 1
    %p62 = scmp.eq.s32.totalorder %s10, 1
    %p63 = scmp.ne.s32.totalorder %s58, %s60
    %p64 = scmp.eq.s32.totalorder %s10, 0
    %p65 = por %p63, %p64
    %p66 = scmp.ne.s32.totalorder %s58, %s60
    %p67 = scmp.eq.s32.totalorder %s15, 1
    %p68 = por %p66, %p67
    %p69 = scmp.ne.s32.totalorder %s60, %s61
    %p70 = scmp.eq.s32.totalorder %s15, 0
    %p71 = por %p69, %p70
    %p72 = scmp.ne.s32.totalorder %s60, %s61
    %p73 = scmp.eq.s32.totalorder %s16, 1
    %p74 = por %p72, %p73
    %p76 = scmp.ne.s32.totalorder %s61, %s75
    %p77 = scmp.eq.s32.totalorder %s16, 0
    %p78 = por %p76, %p77
    %s80 = sadd.s32 %s79, 1
    %p83 = scmp.eq.s32.totalorder %s10, 1
    %p84 = scmp.ne.s32.totalorder %s79, %s81
    %p85 = scmp.eq.s32.totalorder %s10, 0
    %p86 = por %p84, %p85
    %p87 = scmp.ne.s32.totalorder %s79, %s81
    %p88 = scmp.eq.s32.totalorder %s15, 1
    %p89 = por %p87, %p88
    %p90 = scmp.ne.s32.totalorder %s81, %s82
    %p91 = scmp.eq.s32.totalorder %s15, 0
    %p92 = por %p90, %p91
    %p93 = scmp.ne.s32.totalorder %s81, %s82
    %p94 = scmp.eq.s32.totalorder %s16, 1
    %p95 = por %p93, %p94
    %p97 = scmp.ne.s32.totalorder %s82, %s96
    %p98 = scmp.eq.s32.totalorder %s16, 0
    %p99 = por %p97, %p98
    %s101 = sadd.s32 %s100, 1
    %p104 = scmp.eq.s32.totalorder %s10, 1
    %p105 = scmp.ne.s32.totalorder %s100, %s102
    %p106 = scmp.eq.s32.totalorder %s10, 0
    %p107 = por %p105, %p106
    %p108 = scmp.ne.s32.totalorder %s100, %s102
    %p109 = scmp.eq.s32.totalorder %s15, 1
    %p110 = por %p108, %p109
    %p111 = scmp.ne.s32.totalorder %s102, %s103
    %p112 = scmp.eq.s32.totalorder %s15, 0
    %p113 = por %p111, %p112
    %p114 = scmp.ne.s32.totalorder %s102, %s103
    %p115 = scmp.eq.s32.totalorder %s16, 1
    %p116 = por %p114, %p115
    %p118 = scmp.ne.s32.totalorder %s103, %s117
    %p119 = scmp.eq.s32.totalorder %s16, 0
    %p120 = por %p118, %p119
    %s121 = ssub.s32 %s17, %s29
    %s122 = ssub.s32 %s18, %s25
    %s123 = sor.u32 %s121, %s122
    %p124 = scmp.eq.s32.totalorder %s123, 0
    %s126 = sadd.s32 %s125, 1
    %s127 = scalar_select %p124, %s125, %s126
    %p130 = pneg %p124
    %p131 = scmp.eq.s32.totalorder %s10, 1
    %p132 = por %p130, %p131
    %p133 = scmp.ne.s32.totalorder %s125, %s128
    %p134 = scmp.eq.s32.totalorder %s10, 0
    %p135 = por %p133, %p134
    %p136 = scmp.ne.s32.totalorder %s125, %s128
    %p137 = scmp.eq.s32.totalorder %s15, 1
    %p138 = por %p136, %p137
    %p139 = scmp.ne.s32.totalorder %s128, %s129
    %p140 = scmp.eq.s32.totalorder %s15, 0
    %p141 = por %p139, %p140
    %p142 = scmp.ne.s32.totalorder %s128, %s129
    %p143 = scmp.eq.s32.totalorder %s16, 1
    %p144 = por %p142, %p143
    %p146 = scmp.ne.s32.totalorder %s129, %s145
    %p147 = scmp.eq.s32.totalorder %s16, 0
    %p148 = por %p146, %p147
    %p149 = scmp.le.s32.totalorder 1, %s10
    %p150 = scmp.lt.s32.totalorder %s10, 3
    %p151 = pnand %p149, %p150
    %p152 = pneg %p151
    // Predicated region
    $region9: #{conv_forward.1} parent=5 // pred_check
      _
    $region10: #{conv_forward.1} parent=5 // pred_check_branch
      %154 = sbr.rel (%p151) target = $region12
    $region11: #{conv_forward.1} parent=5 // pred_region
      %s155 = ssub.s32 %s10, 1
      // Predicated region
      $region13: #{conv_forward.1} parent=11 // pred_check
        %p156 = pneg %p71
      $region14: #{conv_forward.1} parent=11 // pred_check_branch
        %158 = sbr.rel (%p156) target = $region16
      $region15: #{conv_forward.1} parent=11 // pred_region
        _
      $region16: #{conv_forward.1} parent=11 // pred_fallthru
        _
      // Predicated region
      $region17: #{conv_forward.1} parent=11 // pred_check
        %p159 = pneg %p92
      $region18: #{conv_forward.1} parent=11 // pred_check_branch
        %161 = sbr.rel (%p159) target = $region20
      $region19: #{conv_forward.1} parent=11 // pred_region
        _
      $region20: #{conv_forward.1} parent=11 // pred_fallthru
        _
      // Predicated region
      $region21: #{conv_forward.1} parent=11 // pred_check
        %p162 = pneg %p113
      $region22: #{conv_forward.1} parent=11 // pred_check_branch
        %164 = sbr.rel (%p162) target = $region24
      $region23: #{conv_forward.1} parent=11 // pred_region
        _
      $region24: #{conv_forward.1} parent=11 // pred_fallthru
        _
    $region12: #{conv_forward.1} parent=5 // pred_fallthru
      _
    %p165 = scmp.lt.s32.totalorder %s10, 2
    // Predicated region
    $region25: #{conv_forward.1} parent=5 // pred_check
      %p166 = pneg %p165
    $region26: #{conv_forward.1} parent=5 // pred_check_branch
      %168 = sbr.rel (%p166) target = $region28
    $region27: #{conv_forward.1} parent=5 // pred_region
      // Predicated region
      $region29: #{conv_forward.1} parent=27 // pred_check
        %p169 = pneg %p44
      $region30: #{conv_forward.1} parent=27 // pred_check_branch
        %171 = sbr.rel (%p169) target = $region32
      $region31: #{conv_forward.1} parent=27 // pred_region
        %s172 = smul.u32 2, %s18
        %p173 = scmp.lt.s32.totalorder %s17, 1
        %s174 = scalar_select %p173, %s17, 1
        %p175 = scmp.lt.s32.totalorder %s172, 1
        %s176 = scalar_select %p175, %s172, 1
        %s177 = smul.addr %s174, 2
        %s178 = sadd.s32 %s176, %s177
        %s179 = smul.addr %s178, 4
        %s180 = scalar_lea.vmem %s0, %s179
        %s181 = smul.u32 2, %s18
      $region32: #{conv_forward.1} parent=27 // pred_fallthru
        _
    $region28: #{conv_forward.1} parent=5 // pred_fallthru
      _
    %p182 = scmp.le.s32.totalorder 1, %s10
    %p183 = scmp.lt.s32.totalorder %s10, 3
    %p184 = pnand %p182, %p183
    %p185 = pneg %p184
    // Predicated region
    $region33: #{conv_forward.1} parent=5 // pred_check
      _
    $region34: #{conv_forward.1} parent=5 // pred_check_branch
      %187 = sbr.rel (%p184) target = $region36
    $region35: #{conv_forward.1} parent=5 // pred_region
      %s188 = ssub.s32 %s10, 1
      %s189 = smul.u32 2, %s20
      %p190 = scmp.lt.s32.totalorder %s19, 1
      %s191 = scalar_select %p190, %s19, 1
      %p192 = scmp.lt.s32.totalorder %s189, 1
      %s193 = scalar_select %p192, %s189, 1
      %s194 = smul.addr %s191, 2
      %s195 = sadd.s32 %s193, %s194
      %s196 = smul.addr %s195, 4
      %s197 = scalar_lea.vmem %s0, %s196
      %p198 = pneg %p50
      %p199 = pneg %p47
      %p200 = pneg %p71
      %p201 = pneg %p68
      %p202 = pneg %p92
      %p203 = pneg %p89
      %p204 = pneg %p113
      %p205 = pneg %p110
      %p206 = pneg %p141
      %p207 = pneg %p138
      %s208 = smul.u32 2, %s20
      %p209 = scmp.lt.s32.totalorder %s19, 1
      %s210 = scalar_select %p209, %s19, 1
      %p211 = scmp.lt.s32.totalorder %s208, 1
      %s212 = scalar_select %p211, %s208, 1
      %s213 = smul.addr %s210, 2
      %s214 = sadd.s32 %s212, %s213
      %s215 = smul.addr %s214, 8
      %s216 = scalar_lea.vmem %s4, %s215
      %s217 = smul.u32 2, %s20
      %p218 = scmp.lt.s32.totalorder %s19, 1
      %s219 = scalar_select %p218, %s19, 1
      %p220 = scmp.lt.s32.totalorder %s217, 1
      %s221 = scalar_select %p220, %s217, 1
      %s222 = smul.addr %s219, 2
      %s223 = sadd.s32 %s221, %s222
      %s224 = smul.addr %s223, 4
      %s225 = scalar_lea.vmem %s0, %s224
      %s226 = smul.u32 2, %s20
      %s227 = smul.u32 2, %s20
      %p228 = scmp.lt.s32.totalorder %s19, 1
      %s229 = scalar_select %p228, %s19, 1
      %p230 = scmp.lt.s32.totalorder %s227, 1
      %s231 = scalar_select %p230, %s227, 1
      %s232 = smul.addr %s229, 2
      %s233 = sadd.s32 %s231, %s232
      %s234 = smul.addr %s233, 8
      %s235 = scalar_lea.vmem %s4, %s234
      %s236 = smul.u32 2, %s20
      %v237 = vld [vmem:[%s225] sm:$0xff]
      %v238 = vld [vmem:[%s1] sm:$0xff]
      %v240 = vcombine.high %v237, %v237
      %vm241 = vcmask 31744
      %v243 = vsel %vm241, %v238, 0
      %vm245 = vcmask 1043456
      %v246 = vsel %vm245, %v237, 0
      %v248 = vsel %vm245, %v240, 0
      %250 = vmatprep.subr.mxu0 %v248
      %251 = vmatpush1.msra.mxu0 %v246
      %252 = vmatprep.subr.mxu0 0.0
      %253 = vmatpush1.msra.mxu0 0.0
      %254 = vmatprep.subr.mxu0 0.0
      %255 = vmatpush1.msra.mxu0 0.0
      %256 = vmatprep.subr.mxu0 0.0
      %257 = vmatpush1.msra.mxu0 0.0
      %258 = vmatprep.subr.mxu0 0.0
      %259 = vmatpush1.msra.mxu0 0.0
      %260 = vmatprep.subr.mxu0 0.0
      %261 = vmatpush1.msra.mxu0 0.0
      %262 = vmatprep.subr.mxu0 0.0
      %263 = vmatpush1.msra.mxu0 0.0
      %264 = vmatprep.subr.mxu0 0.0
      %265 = vmatpush1.msra.mxu0 0.0
      %266 = vmatprep.subr.mxu0 0.0
      %267 = vmatpush1.msra.mxu0 0.0
      %268 = vmatprep.subr.mxu0 0.0
      %269 = vmatpush1.msra.mxu0 0.0
      %270 = vmatprep.subr.mxu0 0.0
      %271 = vmatpush1.msra.mxu0 0.0
      %272 = vmatprep.subr.mxu0 0.0
      %273 = vmatpush1.msra.mxu0 0.0
      %274 = vmatprep.subr.mxu0 0.0
      %275 = vmatpush1.msra.mxu0 0.0
      %276 = vmatprep.subr.mxu0 0.0
      %277 = vmatpush1.msra.mxu0 0.0
      %278 = vmatprep.subr.mxu0 0.0
      %279 = vmatpush1.msra.mxu0 0.0
      %280 = vmatprep.subr.mxu0 0.0
      %281 = vmatpush1.msra.mxu0 0.0
      %282 = vmatprep.subr.mxu0 0.0
      %283 = vmatpush1.msra.mxu0 0.0
      %284 = vmatprep.subr.mxu0 0.0
      %285 = vmatpush1.msra.mxu0 0.0
      %286 = vmatprep.subr.mxu0 0.0
      %287 = vmatpush1.msra.mxu0 0.0
      %288 = vmatprep.subr.mxu0 0.0
      %289 = vmatpush1.msra.mxu0 0.0
      %290 = vmatprep.subr.mxu0 0.0
      %291 = vmatpush1.msra.mxu0 0.0
      %292 = vmatprep.subr.mxu0 0.0
      %293 = vmatpush1.msra.mxu0 0.0
      %294 = vmatprep.subr.mxu0 0.0
      %295 = vmatpush1.msra.mxu0 0.0
      %296 = vmatprep.subr.mxu0 0.0
      %297 = vmatpush1.msra.mxu0 0.0
      %298 = vmatprep.subr.mxu0 0.0
      %299 = vmatpush1.msra.mxu0 0.0
      %300 = vmatprep.subr.mxu0 0.0
      %301 = vmatpush1.msra.mxu0 0.0
      %302 = vmatprep.subr.mxu0 0.0
      %303 = vmatpush1.msra.mxu0 0.0
      %304 = vmatprep.subr.mxu0 0.0
      %305 = vmatpush1.msra.mxu0 0.0
      %306 = vmatprep.subr.mxu0 0.0
      %307 = vmatpush1.msra.mxu0 0.0
      %308 = vmatprep.subr.mxu0 0.0
      %309 = vmatpush1.msra.mxu0 0.0
      %310 = vmatprep.subr.mxu0 0.0
      %311 = vmatpush1.msra.mxu0 0.0
      %312 = vmatprep.subr.mxu0 0.0
      %313 = vmatpush1.msra.mxu0 0.0
      %314 = vmatprep.mubr.f32.mxu0 0.0
      %315 = vmatmul.mubr.f32.gmra.mrb[0].mxu0 %v243
      %v316 = vpop.f32.mrb[0].mxu0
      %v317 = vadd.f32 0.0, %v316
      %v318 = vpop.f32.mrb[0].mxu0
      %v319 = vadd.f32 0.0, %v318
      %320 = vdwg.mxu0
      %v321 = vld [vmem:[%s2] sm:$0xff]
      %323 = vset.pattern.permute.xlu0 0
      %324 = vperm.xlu0 %323, %v321
      %v325 = vpop.permute.xlu0 %324
      %v327 = vmul.f32 %v317, %v325
      %v328 = vmul.f32 %v319, %v325
      %v329 = vld [vmem:[%s3] sm:$0xff]
      %331 = vset.pattern.permute.xlu0 0
      %332 = vperm.xlu0 %331, %v329
      %v333 = vpop.permute.xlu0 %332
      %v335 = vadd.f32 %v327, %v333
      %v336 = vadd.f32 %v328, %v333
      %v337 = vsub.f32 0.0, %v335
      %v338 = vsub.f32 0.0, %v336
      %v339 = vmul.f32 %v337, 1.442695
      %v340 = vpow.pop %v339
      %v341 = vmul.f32 %v338, 1.442695
      %v342 = vpow.pop %v341
      %v343 = vadd.f32 %v340, 1.0
      %v344 = vadd.f32 %v342, 1.0
      %v345 = vrcp.pop %v343
      %v346 = vrcp.pop %v344
      %v347 = vmul.f32 %v335, %v345
      %v348 = vmul.f32 %v336, %v346
      %349 = vst [vmem:[%s235] sm:$0xff] %v347
      %350 = vst [vmem:[%s235 + $0x8] sm:$0xff] %v348
      %s351 = smul.u32 2, %s20
      %p352 = scmp.lt.s32.totalorder %s19, 1
      %s353 = scalar_select %p352, %s19, 1
      %p354 = scmp.lt.s32.totalorder %s351, 1
      %s355 = scalar_select %p354, %s351, 1
      %s356 = smul.addr %s353, 2
      %s357 = sadd.s32 %s355, %s356
      %s358 = smul.addr %s357, 8
      %s359 = scalar_lea.vmem %s4, %s358
      // Predicated region
      $region37: #{conv_forward.1} parent=35 // pred_check
        %p360 = pneg %p138
      $region38: #{conv_forward.1} parent=35 // pred_check_branch
        %362 = sbr.rel (%p360) target = $region40
      $region39: #{conv_forward.1} parent=35 // pred_region
        %s363 = smul.u32 2, %s20
      $region40: #{conv_forward.1} parent=35 // pred_fallthru
        _
    $region36: #{conv_forward.1} parent=5 // pred_fallthru
      _
    %p364 = scmp.le.s32.totalorder 2, %s10
    // Predicated region
    $region41: #{conv_forward.1} parent=5 // pred_check
      %p365 = pneg %p364
    $region42: #{conv_forward.1} parent=5 // pred_check_branch
      %367 = sbr.rel (%p365) target = $region44
    $region43: #{conv_forward.1} parent=5 // pred_region
      %s368 = ssub.s32 %s10, 2
      // Predicated region
      $region45: #{conv_forward.1} parent=43 // pred_check
        %p369 = pneg %p144
      $region46: #{conv_forward.1} parent=43 // pred_check_branch
        %371 = sbr.rel (%p369) target = $region48
      $region47: #{conv_forward.1} parent=43 // pred_region
        %s372 = smul.u32 2, %s22
        %p373 = scmp.lt.s32.totalorder %s21, 1
        %s374 = scalar_select %p373, %s21, 1
        %p375 = scmp.lt.s32.totalorder %s372, 1
        %s376 = scalar_select %p375, %s372, 1
        %s377 = smul.addr %s374, 2
        %s378 = sadd.s32 %s376, %s377
        %s379 = smul.addr %s378, 8
        %s380 = scalar_lea.vmem %s4, %s379
      $region48: #{conv_forward.1} parent=43 // pred_fallthru
        _
    $region44: #{conv_forward.1} parent=5 // pred_fallthru
      _
  $region6: #{conv_forward.1} parent=0 // loop_footer
    %s14 = sadd.s32 1, %s10
  $region7: #{conv_forward.1} parent=0 // loop_footer_branch
    %9 = sbr.rel target = $region3
  $region8: #{conv_forward.1} parent=0 // loop_exit
    _

</llo_original>
